<compile_context>
chip_gen: v5e
topology: v5e:2x2
jax: 0.10.0
libtpu: 0.0.40
codegen_flags: <defaults>
</compile_context>

<pallas_src>
import math
import jax
import jax.numpy as jnp
from jax.experimental import pallas as pl
from jax.experimental.pallas import tpu as pltpu

_LANE = 128       # hidden feature dims padded (once) to a multiple of this
_ROW_ALIGN = 16   # batch rows aligned to 16 (bf16 packs 2 rows per sublane)
_TB_MAX = 1024    # max batch rows per grid step (VMEM use stays << scoped limits)


def _round_up(n, m):
    return ((n + m - 1) // m) * m


def _pad2d(a, rows, cols):
    return jnp.pad(a, ((0, rows - a.shape[0]), (0, cols - a.shape[1])))


def dqn_mlp_kernel(x_ref, w1_ref, b1_ref, w2_ref, b2_ref, w3_ref, b3_ref, o_ref):
    """Fused 3-layer MLP forward on one batch tile.

    x arrives f32 at its natural feature width and is cast to bf16 for the MXU;
    weights are pre-padded bf16; accumulation and the bias+ReLU epilogue are f32.
    """
    x = x_ref[...].astype(jnp.bfloat16)
    h1 = jnp.dot(x, w1_ref[...], preferred_element_type=jnp.float32) + b1_ref[...]
    h1 = jnp.maximum(h1, 0.0).astype(jnp.bfloat16)
    h2 = jnp.dot(h1, w2_ref[...], preferred_element_type=jnp.float32) + b2_ref[...]
    h2 = jnp.maximum(h2, 0.0).astype(jnp.bfloat16)
    out = jnp.dot(h2, w3_ref[...], preferred_element_type=jnp.float32) + b3_ref[...]
    # TODO(synk): optionally fuse greedy-action argmax here to shrink writeback further.
    o_ref[...] = out.astype(o_ref.dtype)


def prepare_params(params):
    """One-time pad+cast of weights/biases (hoisted out of the per-call hot path).

    Hidden dims are zero-padded to multiples of 128 lanes; zero weight columns plus
    zero bias entries stay zero through ReLU, so the math is unchanged.  w1 keeps its
    natural input dim and w3 its natural output dim so x / the output stream no
    padded bytes.  Weights bf16 (MXU inputs), biases f32 (f32 epilogue adds).
    """
    in_dim, h1_dim = params["w1"].shape
    h2_dim = params["w2"].shape[1]
    out_dim = params["w3"].shape[1]
    h1_p = _round_up(h1_dim, _LANE)
    h2_p = _round_up(h2_dim, _LANE)
    return {
        "w1": _pad2d(params["w1"], in_dim, h1_p).astype(jnp.bfloat16),
        "b1": _pad2d(params["b1"], 1, h1_p).astype(jnp.float32),
        "w2": _pad2d(params["w2"], h1_p, h2_p).astype(jnp.bfloat16),
        "b2": _pad2d(params["b2"], 1, h2_p).astype(jnp.float32),
        "w3": _pad2d(params["w3"], h2_p, out_dim).astype(jnp.bfloat16),
        "b3": params["b3"].astype(jnp.float32),
    }


@jax.jit
def dqn_forward(x, prepared):
    """Forward pass of DQNetwork.

    x: (batch, input_dim) f32.
    prepared: output of prepare_params (pre-padded bf16 weights, f32 biases).
    Returns (batch, output_dim) f32 Q-values.
    """
    batch, in_dim = x.shape
    out_dim = prepared["w3"].shape[1]

    # Batch tiling: pad rows to a multiple of 16 only; pl.cdiv handles a partial last
    # tile (no fully-dead tail tiles).  Split into >=2 steps once the batch is large
    # enough so 'parallel' can span both TensorCores on v7x.
    batch_p = _round_up(batch, _ROW_ALIGN)
    if batch_p >= 2 * _ROW_ALIGN:
        tb = min(_TB_MAX, _round_up(pl.cdiv(batch_p, 2), _ROW_ALIGN))
    else:
        tb = batch_p
    grid = (pl.cdiv(batch_p, tb),)

    x_p = x if batch_p == batch else jnp.pad(x, ((0, batch_p - batch), (0, 0)))

    # Weights/biases stay VMEM-resident across grid steps (constant block index).
    resident = lambda arr: pl.BlockSpec(arr.shape, lambda i: (0,) * arr.ndim)

    out_padded = pl.pallas_call(
        dqn_mlp_kernel,
        out_shape=jax.ShapeDtypeStruct((batch_p, out_dim), jnp.float32),
        grid=grid,
        in_specs=[
            pl.BlockSpec((tb, in_dim), lambda i: (i, 0)),        # x: tiled over batch
            resident(prepared["w1"]), resident(prepared["b1"]),
            resident(prepared["w2"]), resident(prepared["b2"]),
            resident(prepared["w3"]), resident(prepared["b3"]),
        ],
        out_specs=pl.BlockSpec((tb, out_dim), lambda i: (i, 0)),  # natural out_dim, f32
        compiler_params=pltpu.CompilerParams(
            dimension_semantics=("parallel",),
        ),
    )(x_p, prepared["w1"], prepared["b1"], prepared["w2"], prepared["b2"],
      prepared["w3"], prepared["b3"])

    return out_padded[:batch]


def init_linear(key, in_dim, out_dim):
    """Deterministic init mimicking PyTorch nn.Linear default (uniform +/- 1/sqrt(fan_in))."""
    kw, kb = jax.random.split(key)
    bound = 1.0 / math.sqrt(in_dim)
    # PyTorch weight is (out, in); store transposed (in, out) for the kernel.
    w = jax.random.uniform(kw, (in_dim, out_dim), jnp.float32, -bound, bound)
    b = jax.random.uniform(kb, (1, out_dim), jnp.float32, -bound, bound)
    return w, b


def make_dqn_params(key, input_dim, output_dim, structure=(64, 32)):
    k1, k2, k3 = jax.random.split(key, 3)
    w1, b1 = init_linear(k1, input_dim, structure[0])
    w2, b2 = init_linear(k2, structure[0], structure[1])
    w3, b3 = init_linear(k3, structure[1], output_dim)
    return {"w1": w1, "b1": b1, "w2": w2, "b2": b2, "w3": w3, "b3": b3}


def dqn_reference(x, p):
    h = jnp.maximum(x @ p["w1"] + p["b1"], 0.0)
    h = jnp.maximum(h @ p["w2"] + p["b2"], 0.0)
    return h @ p["w3"] + p["b3"]


if __name__ == "__main__":
    key = jax.random.PRNGKey(0)
    kx1, kx2, kp = jax.random.split(key, 3)

    input_dim, output_dim = 16, 8
    structure = (64, 32)

    params = make_dqn_params(kp, input_dim, output_dim, structure)
    prepared = jax.block_until_ready(prepare_params(params))   # one-time, off the hot path

    def check(x):
        out = jax.block_until_ready(dqn_forward(x, prepared))
        ref = dqn_reference(x, params)
        assert out.shape == ref.shape, (out.shape, ref.shape)
        # bf16 MXU inputs with f32 accumulation: allow ~1% relative tolerance.
        tol = 2e-2 * (1.0 + float(jnp.max(jnp.abs(ref))))
        max_err = float(jnp.max(jnp.abs(out - ref)))
        assert max_err <= tol, (max_err, tol)

    # Tiny batch: single grid step.
    check(jax.random.normal(kx1, (8, input_dim), jnp.float32))
    # Non-multiple-of-16 batch: 2 grid steps + partial last tile (dual-TC path on v7x).
    check(jax.random.normal(kx2, (40, input_dim), jnp.float32))

    print("KERNEL_OK")
</pallas_src>

<mosaic_0001>
module attributes {stable_mosaic.version = 11 : i64} {
  func.func @dqn_mlp_kernel(%arg0: i32, %arg1: memref<16x16xf32, #tpu.memory_space<vmem>>, %arg2: memref<16x128xbf16, #tpu.memory_space<vmem>>, %arg3: memref<1x128xf32, #tpu.memory_space<vmem>>, %arg4: memref<128x128xbf16, #tpu.memory_space<vmem>>, %arg5: memref<1x128xf32, #tpu.memory_space<vmem>>, %arg6: memref<128x8xbf16, #tpu.memory_space<vmem>>, %arg7: memref<1x8xf32, #tpu.memory_space<vmem>>, %arg8: memref<16x8xf32, #tpu.memory_space<vmem>>) attributes {dimension_semantics = [#tpu.dimension_semantics<parallel>], iteration_bounds = array<i64: 1>, scalar_prefetch = 0 : i64, scratch_operands = 0 : i64, tpu.core_type = #tpu.core_type<tc>, window_params = [{transform_indices = @transform_0, window_bounds = array<i64: 16, 16>}, {pipeline_mode = #tpu.pipeline_mode<synchronous>, transform_indices = @transform_1, window_bounds = array<i64: 16, 128>}, {pipeline_mode = #tpu.pipeline_mode<synchronous>, transform_indices = @transform_2, window_bounds = array<i64: 1, 128>}, {pipeline_mode = #tpu.pipeline_mode<synchronous>, transform_indices = @transform_3, window_bounds = array<i64: 128, 128>}, {pipeline_mode = #tpu.pipeline_mode<synchronous>, transform_indices = @transform_4, window_bounds = array<i64: 1, 128>}, {pipeline_mode = #tpu.pipeline_mode<synchronous>, transform_indices = @transform_5, window_bounds = array<i64: 128, 8>}, {pipeline_mode = #tpu.pipeline_mode<synchronous>, transform_indices = @transform_6, window_bounds = array<i64: 1, 8>}, {transform_indices = @transform_7, window_bounds = array<i64: 16, 8>}]} {
    %c0 = arith.constant 0 : index
    %c0_0 = arith.constant 0 : index
    %0 = vector.load %arg1[%c0, %c0_0] : memref<16x16xf32, #tpu.memory_space<vmem>>, vector<16x16xf32>
    %1 = arith.truncf %0 : vector<16x16xf32> to vector<16x16xbf16>
    %c0_1 = arith.constant 0 : index
    %c0_2 = arith.constant 0 : index
    %2 = vector.load %arg2[%c0_1, %c0_2] : memref<16x128xbf16, #tpu.memory_space<vmem>>, vector<16x128xbf16>
    %cst = arith.constant dense<0.000000e+00> : vector<16x128xf32>
    %3 = tpu.matmul %1, %2, %cst {dimension_numbers = #tpu.dot_dimension_numbers<[1], [0], [0], [1], [0, 0, 1, 1], [], []>} : vector<16x16xbf16>, vector<16x128xbf16>, vector<16x128xf32> -> vector<16x128xf32>
    %c0_3 = arith.constant 0 : index
    %c0_4 = arith.constant 0 : index
    %4 = vector.load %arg3[%c0_3, %c0_4] : memref<1x128xf32, #tpu.memory_space<vmem>>, vector<1x128xf32>
    %5 = vector.broadcast %4 : vector<1x128xf32> to vector<16x128xf32>
    %6 = arith.addf %3, %5 : vector<16x128xf32>
    %cst_5 = arith.constant 0.000000e+00 : f32
    %7 = vector.broadcast %cst_5 : f32 to vector<16x128xf32>
    %8 = arith.maximumf %6, %7 : vector<16x128xf32>
    %9 = arith.truncf %8 : vector<16x128xf32> to vector<16x128xbf16>
    %c0_6 = arith.constant 0 : index
    %c0_7 = arith.constant 0 : index
    %10 = vector.load %arg4[%c0_6, %c0_7] : memref<128x128xbf16, #tpu.memory_space<vmem>>, vector<128x128xbf16>
    %cst_8 = arith.constant dense<0.000000e+00> : vector<16x128xf32>
    %11 = tpu.matmul %9, %10, %cst_8 {dimension_numbers = #tpu.dot_dimension_numbers<[1], [0], [0], [1], [0, 0, 1, 1], [], []>} : vector<16x128xbf16>, vector<128x128xbf16>, vector<16x128xf32> -> vector<16x128xf32>
    %c0_9 = arith.constant 0 : index
    %c0_10 = arith.constant 0 : index
    %12 = vector.load %arg5[%c0_9, %c0_10] : memref<1x128xf32, #tpu.memory_space<vmem>>, vector<1x128xf32>
    %13 = vector.broadcast %12 : vector<1x128xf32> to vector<16x128xf32>
    %14 = arith.addf %11, %13 : vector<16x128xf32>
    %cst_11 = arith.constant 0.000000e+00 : f32
    %15 = vector.broadcast %cst_11 : f32 to vector<16x128xf32>
    %16 = arith.maximumf %14, %15 : vector<16x128xf32>
    %17 = arith.truncf %16 : vector<16x128xf32> to vector<16x128xbf16>
    %c0_12 = arith.constant 0 : index
    %c0_13 = arith.constant 0 : index
    %18 = vector.load %arg6[%c0_12, %c0_13] : memref<128x8xbf16, #tpu.memory_space<vmem>>, vector<128x8xbf16>
    %cst_14 = arith.constant dense<0.000000e+00> : vector<16x8xf32>
    %19 = tpu.matmul %17, %18, %cst_14 {dimension_numbers = #tpu.dot_dimension_numbers<[1], [0], [0], [1], [0, 0, 1, 1], [], []>} : vector<16x128xbf16>, vector<128x8xbf16>, vector<16x8xf32> -> vector<16x8xf32>
    %c0_15 = arith.constant 0 : index
    %c0_16 = arith.constant 0 : index
    %20 = vector.load %arg7[%c0_15, %c0_16] : memref<1x8xf32, #tpu.memory_space<vmem>>, vector<1x8xf32>
    %21 = vector.broadcast %20 : vector<1x8xf32> to vector<16x8xf32>
    %22 = arith.addf %19, %21 : vector<16x8xf32>
    %c0_17 = arith.constant 0 : index
    %c0_18 = arith.constant 0 : index
    %23 = vector.load %arg8[%c0_17, %c0_18] : memref<16x8xf32, #tpu.memory_space<vmem>>, vector<16x8xf32>
    tpu.vector_store %arg8[%c0_17, %c0_18], %22 {strides = array<i32>} : memref<16x8xf32, #tpu.memory_space<vmem>>, vector<16x8xf32>,
    return
  }
  func.func @transform_0(%arg0: i32) -> (i32, i32) {
    %c0_i32 = arith.constant 0 : i32
    %c0_i32_0 = arith.constant 0 : i32
    return %arg0, %c0_i32 : i32, i32
  }
  func.func @transform_1(%arg0: i32) -> (i32, i32) {
    %c0_i32 = arith.constant 0 : i32
    %c0_i32_0 = arith.constant 0 : i32
    %c0_i32_1 = arith.constant 0 : i32
    return %c0_i32, %c0_i32_0 : i32, i32
  }
  func.func @transform_2(%arg0: i32) -> (i32, i32) {
    %c0_i32 = arith.constant 0 : i32
    %c0_i32_0 = arith.constant 0 : i32
    %c0_i32_1 = arith.constant 0 : i32
    return %c0_i32, %c0_i32_0 : i32, i32
  }
  func.func @transform_3(%arg0: i32) -> (i32, i32) {
    %c0_i32 = arith.constant 0 : i32
    %c0_i32_0 = arith.constant 0 : i32
    %c0_i32_1 = arith.constant 0 : i32
    return %c0_i32, %c0_i32_0 : i32, i32
  }
  func.func @transform_4(%arg0: i32) -> (i32, i32) {
    %c0_i32 = arith.constant 0 : i32
    %c0_i32_0 = arith.constant 0 : i32
    %c0_i32_1 = arith.constant 0 : i32
    return %c0_i32, %c0_i32_0 : i32, i32
  }
  func.func @transform_5(%arg0: i32) -> (i32, i32) {
    %c0_i32 = arith.constant 0 : i32
    %c0_i32_0 = arith.constant 0 : i32
    %c0_i32_1 = arith.constant 0 : i32
    return %c0_i32, %c0_i32_0 : i32, i32
  }
  func.func @transform_6(%arg0: i32) -> (i32, i32) {
    %c0_i32 = arith.constant 0 : i32
    %c0_i32_0 = arith.constant 0 : i32
    %c0_i32_1 = arith.constant 0 : i32
    return %c0_i32, %c0_i32_0 : i32, i32
  }
  func.func @transform_7(%arg0: i32) -> (i32, i32) {
    %c0_i32 = arith.constant 0 : i32
    %c0_i32_0 = arith.constant 0 : i32
    return %arg0, %c0_i32 : i32, i32
  }
}

</mosaic_0001>

<llo_original>
// kernel: dqn_forward.1
$region0: #{dqn_forward.1}
  #allocation0 [shape = 'u32[]', space=smem, size = 0x4, offset = 0x4, fixed_abs, tag = 'smem constant byte address 0x4 - core index']
  #allocation1 [shape = 'u32[72,128]{1,0:T(1,128)}', space=vmem, size = 0x9000, scoped, tag = 'internal scratch']
  %s0 = inlined_call_operand.vmem [shape: f32[16,16], index: 0, kind: input, shape index: {}]
  %s1 = inlined_call_operand.vmem [shape: bf16[16,128], index: 1, kind: input, shape index: {}]
  %s2 = inlined_call_operand.vmem [shape: f32[1,128], index: 2, kind: input, shape index: {}]
  %s3 = inlined_call_operand.vmem [shape: bf16[128,128], index: 3, kind: input, shape index: {}]
  %s4 = inlined_call_operand.vmem [shape: f32[1,128], index: 4, kind: input, shape index: {}]
  %s5 = inlined_call_operand.vmem [shape: bf16[128,8], index: 5, kind: input, shape index: {}]
  %s6 = inlined_call_operand.vmem [shape: f32[1,8], index: 6, kind: input, shape index: {}]
  %s7 = inlined_call_operand.vmem [shape: f32[16,8], index: 7, kind: output, shape index: {}]
  %s8 = sld [smem:[#allocation0]]
  $region38: #{dqn_forward.1} parent=0
    _
  %s10 = ssub.s32 1, %s8
  %s11 = scalar_select 0, %s10, %s8
  // Predicated region
  $region2: #{dqn_forward.1} parent=0 // pred_check
    _
  $region3: #{dqn_forward.1} parent=0 // pred_check_branch
    %13 = sbr.rel (0) target = $region5
  $region4: #{dqn_forward.1} parent=0 // pred_region
    _
  $region5: #{dqn_forward.1} parent=0 // pred_fallthru
    _
  // Predicated region
  $region6: #{dqn_forward.1} parent=0 // pred_check
    _
  $region7: #{dqn_forward.1} parent=0 // pred_check_branch
    %15 = sbr.rel (0) target = $region9
  $region8: #{dqn_forward.1} parent=0 // pred_region
    _
  $region9: #{dqn_forward.1} parent=0 // pred_fallthru
    _
  // Predicated region
  $region10: #{dqn_forward.1} parent=0 // pred_check
    _
  $region11: #{dqn_forward.1} parent=0 // pred_check_branch
    %17 = sbr.rel (0) target = $region13
  $region12: #{dqn_forward.1} parent=0 // pred_region
    _
  $region13: #{dqn_forward.1} parent=0 // pred_fallthru
    _
  // Predicated region
  $region14: #{dqn_forward.1} parent=0 // pred_check
    _
  $region15: #{dqn_forward.1} parent=0 // pred_check_branch
    %19 = sbr.rel (0) target = $region17
  $region16: #{dqn_forward.1} parent=0 // pred_region
    _
  $region17: #{dqn_forward.1} parent=0 // pred_fallthru
    _
  // Predicated region
  $region18: #{dqn_forward.1} parent=0 // pred_check
    _
  $region19: #{dqn_forward.1} parent=0 // pred_check_branch
    %21 = sbr.rel (0) target = $region21
  $region20: #{dqn_forward.1} parent=0 // pred_region
    _
  $region21: #{dqn_forward.1} parent=0 // pred_fallthru
    _
  // Predicated region
  $region22: #{dqn_forward.1} parent=0 // pred_check
    _
  $region23: #{dqn_forward.1} parent=0 // pred_check_branch
    %23 = sbr.rel (0) target = $region25
  $region24: #{dqn_forward.1} parent=0 // pred_region
    _
  $region25: #{dqn_forward.1} parent=0 // pred_fallthru
    _
  // Predicated region
  $region26: #{dqn_forward.1} parent=0 // pred_check
    _
  $region27: #{dqn_forward.1} parent=0 // pred_check_branch
    %25 = sbr.rel (0) target = $region29
  $region28: #{dqn_forward.1} parent=0 // pred_region
    _
  $region29: #{dqn_forward.1} parent=0 // pred_fallthru
    _
  %v27 = vld [vmem:[%s0] sm:$0xff]
  %v28 = vld [vmem:[%s0 + $0x8] sm:$0xff]
  %v29 = vpack.c.bf16 %v28, %v27
  %v30 = vld [vmem:[%s1] sm:$0xf]
  %v31 = vld [vmem:[%s1 + $0x4] sm:$0xf]
  %v32 = vld [vmem:[%s2] sm:$0x1]
  %v34 = vperm.slane %v32, 0
  %v38 = vunpack.c.l.b16 %v30
  %v39 = vunpack.c.l.b16 %v31
  %v40 = vpack.c.b16 %v39, %v38
  %vm42 = vcmask 130048
  %v44 = vsel %vm42, %v29, 0
  %46 = vmatpush.bf16.msra.mxu0 0
  %47 = vmatpush.bf16.msra.mxu0 0
  %48 = vmatpush.bf16.msra.mxu0 0
  %49 = vmatpush.bf16.msra.mxu0 0
  %50 = vmatpush.bf16.msra.mxu0 0
  %51 = vmatpush.bf16.msra.mxu0 0
  %52 = vmatpush.bf16.msra.mxu0 0
  %53 = vmatpush.bf16.msra.mxu0 %v40
  %54 = vmatmul.bf16.gmra.mxu0 %v44
  %v55 = vpop.f32.mrf.mxu0
  %v56 = vadd.f32 %v34, %v55
  %v57 = vpop.f32.mrf.mxu0
  %v58 = vadd.f32 %v34, %v57
  %59 = vdwg.mxu0
  %v60 = vmax.f32 %v56, 0.0
  %v61 = vmax.f32 %v58, 0.0
  %v62 = vpack.c.bf16 %v61, %v60
  %v63 = vld [vmem:[%s3] sm:$0xf]
  %v64 = vld [vmem:[%s3 + $0x4] sm:$0xf]
  %v65 = vld [vmem:[%s3 + $0x8] sm:$0xf]
  %v66 = vld [vmem:[%s3 + $0xc] sm:$0xf]
  %v67 = vld [vmem:[%s3 + $0x10] sm:$0xf]
  %v68 = vld [vmem:[%s3 + $0x14] sm:$0xf]
  %v69 = vld [vmem:[%s3 + $0x18] sm:$0xf]
  %v70 = vld [vmem:[%s3 + $0x1c] sm:$0xf]
  %v71 = vld [vmem:[%s3 + $0x20] sm:$0xf]
  %v72 = vld [vmem:[%s3 + $0x24] sm:$0xf]
  %v73 = vld [vmem:[%s3 + $0x28] sm:$0xf]
  %v74 = vld [vmem:[%s3 + $0x2c] sm:$0xf]
  %v75 = vld [vmem:[%s3 + $0x30] sm:$0xf]
  %v76 = vld [vmem:[%s3 + $0x34] sm:$0xf]
  %v77 = vld [vmem:[%s3 + $0x38] sm:$0xf]
  %v78 = vld [vmem:[%s3 + $0x3c] sm:$0xf]
  %v79 = vld [vmem:[%s4] sm:$0x1]
  %v81 = vperm.slane %v79, 0
  %v99 = vunpack.c.l.b16 %v63
  %v100 = vunpack.c.l.b16 %v64
  %v101 = vunpack.c.l.b16 %v65
  %v102 = vunpack.c.l.b16 %v66
  %v103 = vunpack.c.l.b16 %v67
  %v104 = vunpack.c.l.b16 %v68
  %v105 = vunpack.c.l.b16 %v69
  %v106 = vunpack.c.l.b16 %v70
  %v107 = vunpack.c.l.b16 %v71
  %v108 = vunpack.c.l.b16 %v72
  %v109 = vunpack.c.l.b16 %v73
  %v110 = vunpack.c.l.b16 %v74
  %v111 = vunpack.c.l.b16 %v75
  %v112 = vunpack.c.l.b16 %v76
  %v113 = vunpack.c.l.b16 %v77
  %v114 = vunpack.c.l.b16 %v78
  %v115 = vpack.c.b16 %v100, %v99
  %v116 = vpack.c.b16 %v102, %v101
  %v117 = vpack.c.b16 %v104, %v103
  %v118 = vpack.c.b16 %v106, %v105
  %v119 = vpack.c.b16 %v108, %v107
  %v120 = vpack.c.b16 %v110, %v109
  %v121 = vpack.c.b16 %v112, %v111
  %v122 = vpack.c.b16 %v114, %v113
  %131 = vmatpush.bf16.msra.mxu0 %v122
  %132 = vmatpush.bf16.msra.mxu0 %v121
  %133 = vmatpush.bf16.msra.mxu0 %v120
  %134 = vmatpush.bf16.msra.mxu0 %v119
  %135 = vmatpush.bf16.msra.mxu0 %v118
  %136 = vmatpush.bf16.msra.mxu0 %v117
  %137 = vmatpush.bf16.msra.mxu0 %v116
  %138 = vmatpush.bf16.msra.mxu0 %v115
  %139 = vmatmul.bf16.gmra.mxu0 %v62
  %v140 = vpop.f32.mrf.mxu0
  %v141 = vadd.f32 %v81, %v140
  %v142 = vpop.f32.mrf.mxu0
  %v143 = vadd.f32 %v81, %v142
  %144 = vdwg.mxu0
  %v145 = vmax.f32 %v141, 0.0
  %v146 = vmax.f32 %v143, 0.0
  %v147 = vpack.c.bf16 %v146, %v145
  %v148 = vld [vmem:[%s5] sm:$0xf]
  %v149 = vld [vmem:[%s5 + $0x4] sm:$0xf]
  %v150 = vld [vmem:[%s5 + $0x8] sm:$0xf]
  %v151 = vld [vmem:[%s5 + $0xc] sm:$0xf]
  %v152 = vld [vmem:[%s5 + $0x10] sm:$0xf]
  %v153 = vld [vmem:[%s5 + $0x14] sm:$0xf]
  %v154 = vld [vmem:[%s5 + $0x18] sm:$0xf]
  %v155 = vld [vmem:[%s5 + $0x1c] sm:$0xf]
  %v156 = vld [vmem:[%s5 + $0x20] sm:$0xf]
  %v157 = vld [vmem:[%s5 + $0x24] sm:$0xf]
  %v158 = vld [vmem:[%s5 + $0x28] sm:$0xf]
  %v159 = vld [vmem:[%s5 + $0x2c] sm:$0xf]
  %v160 = vld [vmem:[%s5 + $0x30] sm:$0xf]
  %v161 = vld [vmem:[%s5 + $0x34] sm:$0xf]
  %v162 = vld [vmem:[%s5 + $0x38] sm:$0xf]
  %v163 = vld [vmem:[%s5 + $0x3c] sm:$0xf]
  %v164 = vld [vmem:[%s6] sm:$0x1]
  %v166 = vperm.slane %v164, 0
  %v184 = vunpack.c.l.b16 %v148
  %v185 = vunpack.c.l.b16 %v149
  %v186 = vunpack.c.l.b16 %v150
  %v187 = vunpack.c.l.b16 %v151
  %v188 = vunpack.c.l.b16 %v152
  %v189 = vunpack.c.l.b16 %v153
  %v190 = vunpack.c.l.b16 %v154
  %v191 = vunpack.c.l.b16 %v155
  %v192 = vunpack.c.l.b16 %v156
  %v193 = vunpack.c.l.b16 %v157
  %v194 = vunpack.c.l.b16 %v158
  %v195 = vunpack.c.l.b16 %v159
  %v196 = vunpack.c.l.b16 %v160
  %v197 = vunpack.c.l.b16 %v161
  %v198 = vunpack.c.l.b16 %v162
  %v199 = vunpack.c.l.b16 %v163
  %v200 = vpack.c.b16 %v185, %v184
  %v201 = vpack.c.b16 %v187, %v186
  %v202 = vpack.c.b16 %v189, %v188
  %v203 = vpack.c.b16 %v191, %v190
  %v204 = vpack.c.b16 %v193, %v192
  %v205 = vpack.c.b16 %v195, %v194
  %v206 = vpack.c.b16 %v197, %v196
  %v207 = vpack.c.b16 %v199, %v198
  %216 = vmatpush.bf16.msra.mxu0 %v207
  %217 = vmatpush.bf16.msra.mxu0 %v206
  %218 = vmatpush.bf16.msra.mxu0 %v205
  %219 = vmatpush.bf16.msra.mxu0 %v204
  %220 = vmatpush.bf16.msra.mxu0 %v203
  %221 = vmatpush.bf16.msra.mxu0 %v202
  %222 = vmatpush.bf16.msra.mxu0 %v201
  %223 = vmatpush.bf16.msra.mxu0 %v200
  %224 = vmatmul.bf16.gmra.mxu0 %v147
  %v225 = vpop.f32.mrf.mxu0
  %v226 = vadd.f32 %v166, %v225
  %v227 = vpop.f32.mrf.mxu0
  %v228 = vadd.f32 %v166, %v227
  %229 = vdwg.mxu0
  %vm230 = vcmask 64512
  %231 = vst.msk [vmem:[%s7] sm:$0xff] %vm230, %v226
  %232 = vst.msk [vmem:[%s7 + $0x8] sm:$0xff] %vm230, %v228
  // Predicated region
  $region30: #{dqn_forward.1} parent=0 // pred_check
    _
  $region31: #{dqn_forward.1} parent=0 // pred_check_branch
    %234 = sbr.rel (0) target = $region33
  $region32: #{dqn_forward.1} parent=0 // pred_region
    _
  $region33: #{dqn_forward.1} parent=0 // pred_fallthru
    _
  // Predicated region
  $region34: #{dqn_forward.1} parent=0 // pred_check
    _
  $region35: #{dqn_forward.1} parent=0 // pred_check_branch
    %236 = sbr.rel (0) target = $region37
  $region36: #{dqn_forward.1} parent=0 // pred_region
    _
  $region37: #{dqn_forward.1} parent=0 // pred_fallthru
    _

</llo_original>
